<compile_context>
chip_gen: v7x
topology: tpu7x:2x2x1
jax: 0.10.0
libtpu: 0.0.40
codegen_flags: <defaults>
</compile_context>

<pallas_src>
import functools

import jax
import jax.numpy as jnp
from jax.experimental import pallas as pl
from jax.experimental.pallas import tpu as pltpu

LANES = 128          # lane width; every weight/output feature dim is padded to this
BIAS_ROWS = 16       # 16-row bias slots -> slab offsets aligned for bf16 AND f32 tiles

# Packed-parameter slab row offsets (all multiples of 16 -> tile-aligned static slices).
W1_OFF = 0                       # [input_size(<=128) used rows of 128, 128]
B1_OFF = W1_OFF + LANES          # 128
W2_OFF = B1_OFF + BIAS_ROWS      # 144   [128, 128] (cols 64: are zero)
B2_OFF = W2_OFF + LANES          # 272
W3_OFF = B2_OFF + BIAS_ROWS      # 288   [128, 128] (rows 64: and cols >=num_classes zero)
B3_OFF = W3_OFF + LANES          # 416
SLAB_ROWS = B3_OFF + BIAS_ROWS   # 432


def mlp_kernel(x_ref, p_ref, o_ref, *, input_size):
    """Fused fc1+ReLU -> fc2+ReLU -> fc3 on one (tb, input_size) activation tile."""
    wdt = p_ref.dtype  # weights are used in their stored dtype (bf16 by default)

    # Static slices into the packed parameter slab (zero runtime indexing cost).
    w1 = p_ref[W1_OFF:W1_OFF + input_size, :]   # (F, 128)  -- only the real rows
    b1 = p_ref[B1_OFF:B1_OFF + 1, :]
    w2 = p_ref[W2_OFF:W2_OFF + LANES, :]        # (128, 128)
    b2 = p_ref[B2_OFF:B2_OFF + 1, :]
    w3 = p_ref[W3_OFF:W3_OFF + LANES, :]        # (128, 128)
    b3 = p_ref[B3_OFF:B3_OFF + 1, :]

    x = x_ref[...].astype(wdt)                  # (tb, F); no 128-lane pre-padding needed

    # fc1 + ReLU  (MXU operands in slab dtype, f32 accumulate, f32 elementwise)
    h1 = jnp.dot(x, w1, preferred_element_type=jnp.float32) + b1.astype(jnp.float32)
    h1 = jnp.maximum(h1, 0.0)
    # fc2 + ReLU  (padded fc2 columns come out exactly 0)
    h2 = jnp.dot(h1.astype(wdt), w2,
                 preferred_element_type=jnp.float32) + b2.astype(jnp.float32)
    h2 = jnp.maximum(h2, 0.0)
    # fc3 logits  (lane-dense, unmasked full-width store; padded class cols are 0)
    o_ref[...] = jnp.dot(h2.astype(wdt), w3,
                         preferred_element_type=jnp.float32) + b3.astype(jnp.float32)


def pack_params(w1, b1, w2, b2, w3, b3, *, dtype=jnp.bfloat16):
    """Pack PyTorch-convention params (w: [out, in], b: [out]) into one lane-dense slab.

    Zero padding keeps the padded math exact:
      * fc1 uses only the first `input_size` W1 rows (K = input_size dot)   -> h1 exact
      * W2/b2 columns 64:128 are zero                                       -> h2[:, 64:] == 0
      * W3 rows 64:128, cols >= num_classes, and b3 tail are zero           -> logits exact
    Default dtype bf16 halves the slab DMA; pass jnp.float32 for f32-exact logits.
    """
    input_size = w1.shape[1]
    hidden1 = w1.shape[0]          # 128
    hidden2 = w2.shape[0]          # 64
    num_classes = w3.shape[0]
    slab = jnp.zeros((SLAB_ROWS, LANES), dtype)
    slab = slab.at[W1_OFF:W1_OFF + input_size, :hidden1].set(w1.T.astype(dtype))
    slab = slab.at[B1_OFF, :hidden1].set(b1.astype(dtype))
    slab = slab.at[W2_OFF:W2_OFF + hidden1, :hidden2].set(w2.T.astype(dtype))
    slab = slab.at[B2_OFF, :hidden2].set(b2.astype(dtype))
    slab = slab.at[W3_OFF:W3_OFF + hidden2, :num_classes].set(w3.T.astype(dtype))
    slab = slab.at[B3_OFF, :num_classes].set(b3.astype(dtype))
    return slab


def _round_up(n, m):
    return -(-n // m) * m


def hand_gesture_mlp(x, param_slab, num_classes, *,
                     batch_tile=512, trim=True, vmem_limit_bytes=None):
    """Forward pass of HandGestureCNN.

    x: [B, input_size] f32.
    trim=True  -> logits [B, num_classes] (matches the PyTorch module exactly).
    trim=False -> padded lane-dense [b_pad, 128] f32 (faster: skips the wrapper-side
                  HBM copy).  Columns >= num_classes are exact zeros; rows >= B are
                  garbage and must be masked/ignored by the consumer.
    vmem_limit_bytes: only needed on v5e if batch_tile is pushed past a few thousand rows.
    """
    B, F = x.shape
    assert F <= LANES, "input_size must be <= 128 for this packing"

    # Batch tiling: single block for small batches; for large batches use big tiles and
    # force an even block count so both v7x TensorCores get work ("parallel" grid axis).
    if B <= batch_tile:
        tb = max(8, _round_up(B, 8))
        n_blocks = 1
    else:
        tb = _round_up(batch_tile, 8)
        n_blocks = pl.cdiv(B, tb)
        if n_blocks % 2:
            n_blocks += 1
            tb = max(8, _round_up(pl.cdiv(B, n_blocks), 8))
            n_blocks = pl.cdiv(B, tb)
    b_pad = n_blocks * tb
    if b_pad != B:
        x = jnp.pad(x, ((0, b_pad - B), (0, 0)))   # batch rows only; no lane padding

    out = pl.pallas_call(
        functools.partial(mlp_kernel, input_size=F),
        out_shape=jax.ShapeDtypeStruct((b_pad, LANES), jnp.float32),
        grid_spec=pltpu.PrefetchScalarGridSpec(
            num_scalar_prefetch=0,
            grid=(n_blocks,),
            in_specs=[
                # Activation tile: last dim == full array dim (legal below 128 lanes).
                pl.BlockSpec((tb, F), lambda i: (i, 0)),
                # Weight slab: constant index_map -> stays resident across grid steps.
                pl.BlockSpec((SLAB_ROWS, LANES), lambda i: (0, 0)),
            ],
            out_specs=pl.BlockSpec((tb, LANES), lambda i: (i, 0)),   # lane-dense output
        ),
        compiler_params=pltpu.CompilerParams(
            dimension_semantics=("parallel",),        # megacore sharding on v7x
            vmem_limit_bytes=vmem_limit_bytes,
        ),
    )(x, param_slab)

    if trim:
        return out[:B, :num_classes]
    return out


def init_params(key, input_size, num_classes):
    """Deterministic init mimicking nn.Linear (PyTorch layout: w [out, in], b [out])."""
    def linear(k, fan_in, fan_out):
        kw, kb = jax.random.split(k)
        bound = 1.0 / jnp.sqrt(fan_in)
        w = jax.random.uniform(kw, (fan_out, fan_in), jnp.float32, -bound, bound)
        b = jax.random.uniform(kb, (fan_out,), jnp.float32, -bound, bound)
        return w, b

    k1, k2, k3 = jax.random.split(key, 3)
    w1, b1 = linear(k1, input_size, 128)
    w2, b2 = linear(k2, 128, 64)
    w3, b3 = linear(k3, 64, num_classes)
    return (w1, b1, w2, b2, w3, b3)


def reference(x, params):
    w1, b1, w2, b2, w3, b3 = params
    h = jnp.maximum(x @ w1.T + b1, 0.0)
    h = jnp.maximum(h @ w2.T + b2, 0.0)
    return h @ w3.T + b3


if __name__ == "__main__":
    key = jax.random.PRNGKey(0)
    k_x, k_p, k_x2 = jax.random.split(key, 3)

    input_size = 32
    num_classes = 10

    params = init_params(k_p, input_size, num_classes)
    slab_bf16 = pack_params(*params)                       # default: bf16 slab
    slab_f32 = pack_params(*params, dtype=jnp.float32)     # f32-exact path

    # --- small batch, default bf16-weight fast path ---
    x = jax.random.normal(k_x, (8, input_size), jnp.float32)
    ref = reference(x, params)
    out = jax.block_until_ready(hand_gesture_mlp(x, slab_bf16, num_classes))
    assert out.shape == (8, num_classes)
    assert jnp.allclose(out, ref, atol=5e-2, rtol=5e-2)

    # --- f32-exact slab for callers that need f32-accurate logits ---
    out_f32 = jax.block_until_ready(hand_gesture_mlp(x, slab_f32, num_classes))
    assert jnp.allclose(out_f32, ref, atol=1e-4, rtol=1e-4)

    # --- large batch: multi-block parallel grid (even block count), untrimmed output ---
    B_big = 1280
    x_big = jax.random.normal(k_x2, (B_big, input_size), jnp.float32)
    ref_big = reference(x_big, params)
    out_pad = jax.block_until_ready(
        hand_gesture_mlp(x_big, slab_bf16, num_classes, batch_tile=512, trim=False))
    assert out_pad.shape[1] == LANES and out_pad.shape[0] >= B_big
    assert jnp.allclose(out_pad[:B_big, :num_classes], ref_big, atol=5e-2, rtol=5e-2)
    # Padded class columns are exact zeros by construction.
    assert jnp.all(out_pad[:B_big, num_classes:] == 0.0)

    print("KERNEL_OK")
</pallas_src>

<mosaic_0001>
module attributes {stable_mosaic.version = 11 : i64} {
  func.func @mlp_kernel(%arg0: i32, %arg1: memref<8x32xf32, #tpu.memory_space<vmem>>, %arg2: memref<432x128xbf16, #tpu.memory_space<vmem>>, %arg3: memref<8x128xf32, #tpu.memory_space<vmem>>) attributes {dimension_semantics = [#tpu.dimension_semantics<parallel>], iteration_bounds = array<i64: 1>, scalar_prefetch = 0 : i64, scratch_operands = 0 : i64, tpu.core_type = #tpu.core_type<tc>, window_params = [{transform_indices = @transform_0, window_bounds = array<i64: 8, 32>}, {pipeline_mode = #tpu.pipeline_mode<synchronous>, transform_indices = @transform_1, window_bounds = array<i64: 432, 128>}, {transform_indices = @transform_2, window_bounds = array<i64: 8, 128>}]} {
    %c0 = arith.constant 0 : index
    %c0_0 = arith.constant 0 : index
    %0 = vector.load %arg2[%c0, %c0_0] : memref<432x128xbf16, #tpu.memory_space<vmem>>, vector<32x128xbf16>
    %c128 = arith.constant 128 : index
    %c0_1 = arith.constant 0 : index
    %1 = vector.load %arg2[%c128, %c0_1] : memref<432x128xbf16, #tpu.memory_space<vmem>>, vector<1x128xbf16>
    %c144 = arith.constant 144 : index
    %c0_2 = arith.constant 0 : index
    %2 = vector.load %arg2[%c144, %c0_2] : memref<432x128xbf16, #tpu.memory_space<vmem>>, vector<128x128xbf16>
    %c272 = arith.constant 272 : index
    %c0_3 = arith.constant 0 : index
    %3 = vector.load %arg2[%c272, %c0_3] : memref<432x128xbf16, #tpu.memory_space<vmem>>, vector<1x128xbf16>
    %c288 = arith.constant 288 : index
    %c0_4 = arith.constant 0 : index
    %4 = vector.load %arg2[%c288, %c0_4] : memref<432x128xbf16, #tpu.memory_space<vmem>>, vector<128x128xbf16>
    %c416 = arith.constant 416 : index
    %c0_5 = arith.constant 0 : index
    %5 = vector.load %arg2[%c416, %c0_5] : memref<432x128xbf16, #tpu.memory_space<vmem>>, vector<1x128xbf16>
    %c0_6 = arith.constant 0 : index
    %c0_7 = arith.constant 0 : index
    %6 = vector.load %arg1[%c0_6, %c0_7] : memref<8x32xf32, #tpu.memory_space<vmem>>, vector<8x32xf32>
    %7 = arith.truncf %6 : vector<8x32xf32> to vector<8x32xbf16>
    %cst = arith.constant dense<0.000000e+00> : vector<8x128xf32>
    %8 = tpu.matmul %7, %0, %cst {dimension_numbers = #tpu.dot_dimension_numbers<[1], [0], [0], [1], [0, 0, 1, 1], [], []>} : vector<8x32xbf16>, vector<32x128xbf16>, vector<8x128xf32> -> vector<8x128xf32>
    %9 = arith.extf %1 : vector<1x128xbf16> to vector<1x128xf32>
    %10 = vector.broadcast %9 : vector<1x128xf32> to vector<8x128xf32>
    %11 = arith.addf %8, %10 : vector<8x128xf32>
    %cst_8 = arith.constant 0.000000e+00 : f32
    %12 = vector.broadcast %cst_8 : f32 to vector<8x128xf32>
    %13 = arith.maximumf %11, %12 : vector<8x128xf32>
    %14 = arith.truncf %13 : vector<8x128xf32> to vector<8x128xbf16>
    %cst_9 = arith.constant dense<0.000000e+00> : vector<8x128xf32>
    %15 = tpu.matmul %14, %2, %cst_9 {dimension_numbers = #tpu.dot_dimension_numbers<[1], [0], [0], [1], [0, 0, 1, 1], [], []>} : vector<8x128xbf16>, vector<128x128xbf16>, vector<8x128xf32> -> vector<8x128xf32>
    %16 = arith.extf %3 : vector<1x128xbf16> to vector<1x128xf32>
    %17 = vector.broadcast %16 : vector<1x128xf32> to vector<8x128xf32>
    %18 = arith.addf %15, %17 : vector<8x128xf32>
    %cst_10 = arith.constant 0.000000e+00 : f32
    %19 = vector.broadcast %cst_10 : f32 to vector<8x128xf32>
    %20 = arith.maximumf %18, %19 : vector<8x128xf32>
    %21 = arith.truncf %20 : vector<8x128xf32> to vector<8x128xbf16>
    %cst_11 = arith.constant dense<0.000000e+00> : vector<8x128xf32>
    %22 = tpu.matmul %21, %4, %cst_11 {dimension_numbers = #tpu.dot_dimension_numbers<[1], [0], [0], [1], [0, 0, 1, 1], [], []>} : vector<8x128xbf16>, vector<128x128xbf16>, vector<8x128xf32> -> vector<8x128xf32>
    %23 = arith.extf %5 : vector<1x128xbf16> to vector<1x128xf32>
    %24 = vector.broadcast %23 : vector<1x128xf32> to vector<8x128xf32>
    %25 = arith.addf %22, %24 : vector<8x128xf32>
    %c0_12 = arith.constant 0 : index
    %c0_13 = arith.constant 0 : index
    %26 = vector.load %arg3[%c0_12, %c0_13] : memref<8x128xf32, #tpu.memory_space<vmem>>, vector<8x128xf32>
    tpu.vector_store %arg3[%c0_12, %c0_13], %25 {strides = array<i32>} : memref<8x128xf32, #tpu.memory_space<vmem>>, vector<8x128xf32>,
    return
  }
  func.func @transform_0(%arg0: i32) -> (i32, i32) {
    %c0_i32 = arith.constant 0 : i32
    %c0_i32_0 = arith.constant 0 : i32
    return %arg0, %c0_i32 : i32, i32
  }
  func.func @transform_1(%arg0: i32) -> (i32, i32) {
    %c0_i32 = arith.constant 0 : i32
    %c0_i32_0 = arith.constant 0 : i32
    %c0_i32_1 = arith.constant 0 : i32
    return %c0_i32, %c0_i32_0 : i32, i32
  }
  func.func @transform_2(%arg0: i32) -> (i32, i32) {
    %c0_i32 = arith.constant 0 : i32
    %c0_i32_0 = arith.constant 0 : i32
    return %arg0, %c0_i32 : i32, i32
  }
}

</mosaic_0001>

<llo_original>
// kernel: tpu_custom_call.1
$region0: #{tpu_custom_call.1}
  #allocation0 [shape = 'u32[]', space=smem, size = 0x4, offset = 0x4, fixed_abs, tag = 'smem constant byte address 0x4 - core index']
  #allocation1 [shape = 'u32[144,128]{1,0:T(1,128)}', space=vmem, size = 0x12000, scoped, tag = 'internal scratch']
  %s0 = inlined_call_operand.hbm [shape: f32[8,32], index: 0, kind: input, shape index: {}]
  %s1 = inlined_call_operand.hbm [shape: bf16[432,128], index: 1, kind: input, shape index: {}]
  %s2 = inlined_call_operand.hbm [shape: f32[8,128], index: 2, kind: output, shape index: {}]
  %s3 = sld [smem:[#allocation0]]
  $region26: #{tpu_custom_call.1} parent=0
    _
  %s5 = ssub.s32 1, %s3
  %s6 = scalar_select 0, %s5, %s3
  $region1: #{tpu_custom_call.1} parent=0
    #allocation2 [shape = 'u8[4096]{0}', space=vmem, size = 0x1000, scoped, tag = 'input window, operand 0, single buffered']
    #allocation3 [shape = 's32[1]{0}', space=sflag, size = 0x4, scoped, tag = 'scoped memory for tpu_custom_call.1']
    #allocation4 [shape = 's32[1]{0}', space=sflag, size = 0x4, scoped, tag = 'scoped memory for tpu_custom_call.1']
    #allocation5 [shape = 'u8[110592]{0}', space=vmem, size = 0x1b000, scoped, tag = 'input window, operand 1, single buffered']
    #allocation6 [shape = 's32[1]{0}', space=sflag, size = 0x4, scoped, tag = 'scoped memory for tpu_custom_call.1']
    #allocation7 [shape = 'u8[4096]{0}', space=vmem, size = 0x1000, scoped, tag = 'output window, operand 0, single buffered']
    %7 = vsyncpa [#allocation3], 0
    %8 = vsyncpa [#allocation6], 0
    %9 = vsyncpa [#allocation4], 0
    // Predicated region
    $region2: #{tpu_custom_call.1} parent=1 // pred_check
      _
    $region3: #{tpu_custom_call.1} parent=1 // pred_check_branch
      %11 = sbr.rel (0) target = $region5
    $region4: #{tpu_custom_call.1} parent=1 // pred_region
      %s13 = ssub.s32 128, 128
      %14 = vsyncadd [#allocation3], %s13
      %s16 = sshll.u32 [#allocation2], 4
      %s17 = int_to_ptr.vmem [resolvable:$true] %s16
      %19 = dma.hbm_to_vmem [thread:$0]  %s0, 128, %s17, [#allocation3]
    $region5: #{tpu_custom_call.1} parent=1 // pred_fallthru
      _
    // Predicated region
    $region6: #{tpu_custom_call.1} parent=1 // pred_check
      _
    $region7: #{tpu_custom_call.1} parent=1 // pred_check_branch
      %21 = sbr.rel (0) target = $region9
    $region8: #{tpu_custom_call.1} parent=1 // pred_region
      %s23 = ssub.s32 3456, 3456
      %24 = vsyncadd [#allocation6], %s23
      %s25 = sshll.u32 [#allocation5], 4
      %s26 = int_to_ptr.vmem [resolvable:$true] %s25
      %31 = dma.hbm_to_vmem [thread:$0]  %s1, 3456, %s26, [#allocation6], 64, 64, 4
    $region9: #{tpu_custom_call.1} parent=1 // pred_fallthru
      _
    // Predicated region
    $region10: #{tpu_custom_call.1} parent=1 // pred_check
      _
    $region11: #{tpu_custom_call.1} parent=1 // pred_check_branch
      %33 = sbr.rel (0) target = $region13
    $region12: #{tpu_custom_call.1} parent=1 // pred_region
      %34 = dma.done [#allocation3], 128
    $region13: #{tpu_custom_call.1} parent=1 // pred_fallthru
      _
    // Predicated region
    $region14: #{tpu_custom_call.1} parent=1 // pred_check
      _
    $region15: #{tpu_custom_call.1} parent=1 // pred_check_branch
      %36 = sbr.rel (0) target = $region17
    $region16: #{tpu_custom_call.1} parent=1 // pred_region
      %37 = dma.done [#allocation6], 3456
    $region17: #{tpu_custom_call.1} parent=1 // pred_fallthru
      _
    %v39 = vld [vmem:[#allocation5] sm:$0xf]
    %v40 = vld [vmem:[#allocation5 + $0x4] sm:$0xf]
    %v41 = vld [vmem:[#allocation5 + $0x8] sm:$0xf]
    %v42 = vld [vmem:[#allocation5 + $0xc] sm:$0xf]
    %v43 = vld [vmem:[#allocation5 + $0x40] sm:$0x1]
    %v44 = vld [vmem:[#allocation5 + $0x48] sm:$0xf]
    %v45 = vld [vmem:[#allocation5 + $0x4c] sm:$0xf]
    %v46 = vld [vmem:[#allocation5 + $0x50] sm:$0xf]
    %v47 = vld [vmem:[#allocation5 + $0x54] sm:$0xf]
    %v48 = vld [vmem:[#allocation5 + $0x58] sm:$0xf]
    %v49 = vld [vmem:[#allocation5 + $0x5c] sm:$0xf]
    %v50 = vld [vmem:[#allocation5 + $0x60] sm:$0xf]
    %v51 = vld [vmem:[#allocation5 + $0x64] sm:$0xf]
    %v52 = vld [vmem:[#allocation5 + $0x68] sm:$0xf]
    %v53 = vld [vmem:[#allocation5 + $0x6c] sm:$0xf]
    %v54 = vld [vmem:[#allocation5 + $0x70] sm:$0xf]
    %v55 = vld [vmem:[#allocation5 + $0x74] sm:$0xf]
    %v56 = vld [vmem:[#allocation5 + $0x78] sm:$0xf]
    %v57 = vld [vmem:[#allocation5 + $0x7c] sm:$0xf]
    %v58 = vld [vmem:[#allocation5 + $0x80] sm:$0xf]
    %v59 = vld [vmem:[#allocation5 + $0x84] sm:$0xf]
    %v60 = vld [vmem:[#allocation5 + $0x88] sm:$0x1]
    %v61 = vld [vmem:[#allocation5 + $0x90] sm:$0xf]
    %v62 = vld [vmem:[#allocation5 + $0x94] sm:$0xf]
    %v63 = vld [vmem:[#allocation5 + $0x98] sm:$0xf]
    %v64 = vld [vmem:[#allocation5 + $0x9c] sm:$0xf]
    %v65 = vld [vmem:[#allocation5 + $0xa0] sm:$0xf]
    %v66 = vld [vmem:[#allocation5 + $0xa4] sm:$0xf]
    %v67 = vld [vmem:[#allocation5 + $0xa8] sm:$0xf]
    %v68 = vld [vmem:[#allocation5 + $0xac] sm:$0xf]
    %v69 = vld [vmem:[#allocation5 + $0xb0] sm:$0xf]
    %v70 = vld [vmem:[#allocation5 + $0xb4] sm:$0xf]
    %v71 = vld [vmem:[#allocation5 + $0xb8] sm:$0xf]
    %v72 = vld [vmem:[#allocation5 + $0xbc] sm:$0xf]
    %v73 = vld [vmem:[#allocation5 + $0xc0] sm:$0xf]
    %v74 = vld [vmem:[#allocation5 + $0xc4] sm:$0xf]
    %v75 = vld [vmem:[#allocation5 + $0xc8] sm:$0xf]
    %v76 = vld [vmem:[#allocation5 + $0xcc] sm:$0xf]
    %v77 = vld [vmem:[#allocation5 + $0xd0] sm:$0x1]
    %v78 = vld [vmem:[#allocation2] sm:$0xff]
    %v79 = vpack.c.bf16 %v78, %v78
    %v80 = vunpack.c.l.bf16 %v43
    %v81 = vlaneseq
    %v82 = vshrl.u32 %v81, 7
    %v83 = vsub.s32 0, %v82
    %v84 = vrot.slane %v80, %v83
    %v89 = vunpack.c.l.b16 %v39
    %v90 = vunpack.c.l.b16 %v40
    %v91 = vunpack.c.l.b16 %v41
    %v92 = vunpack.c.l.b16 %v42
    %v93 = vpack.c.b16 %v90, %v89
    %v94 = vpack.c.b16 %v92, %v91
    %vm97 = vcmask 261120
    %v99 = vsel %vm97, %v79, 0
    %101 = vmatprep.subr.bf16.mxu0 0
    %102 = vmatpush1.bf16.msra.mxu0 %v93
    %103 = vmatprep.subr.bf16.mxu0 0
    %104 = vmatpush1.bf16.msra.mxu0 %v94
    %105 = vmatprep.subr.bf16.mxu0 0
    %106 = vmatpush1.bf16.msra.mxu0 0
    %107 = vmatprep.subr.bf16.mxu0 0
    %108 = vmatpush1.bf16.msra.mxu0 0
    %109 = vmatprep.subr.bf16.mxu0 0
    %110 = vmatpush1.bf16.msra.mxu0 0
    %111 = vmatprep.subr.bf16.mxu0 0
    %112 = vmatpush1.bf16.msra.mxu0 0
    %113 = vmatprep.subr.bf16.mxu0 0
    %114 = vmatpush1.bf16.msra.mxu0 0
    %115 = vmatprep.subr.bf16.mxu0 0
    %116 = vmatpush1.bf16.msra.mxu0 0
    %117 = vmatprep.subr.bf16.mxu0 0
    %118 = vmatpush1.bf16.msra.mxu0 0
    %119 = vmatprep.subr.bf16.mxu0 0
    %120 = vmatpush1.bf16.msra.mxu0 0
    %121 = vmatprep.subr.bf16.mxu0 0
    %122 = vmatpush1.bf16.msra.mxu0 0
    %123 = vmatprep.subr.bf16.mxu0 0
    %124 = vmatpush1.bf16.msra.mxu0 0
    %125 = vmatprep.subr.bf16.mxu0 0
    %126 = vmatpush1.bf16.msra.mxu0 0
    %127 = vmatprep.subr.bf16.mxu0 0
    %128 = vmatpush1.bf16.msra.mxu0 0
    %129 = vmatprep.subr.bf16.mxu0 0
    %130 = vmatpush1.bf16.msra.mxu0 0
    %131 = vmatprep.subr.bf16.mxu0 0
    %132 = vmatpush1.bf16.msra.mxu0 0
    %133 = vmatprep.mubr.bf16.mxu0 0
    %134 = vmatmul.mubr.bf16.gmra.mrb[0].mxu0 %v99
    %v135 = vpop.f32.mrb[0].mxu0
    %v136 = vadd.f32 %v84, %v135
    %v137 = vpop.f32.mrb[0].mxu0
    %v138 = vpop.f32.mrb[0].mxu0
    %v139 = vpop.f32.mrb[0].mxu0
    %140 = vdwg.mxu0
    %v141 = vmax.f32 %v136, 0.0
    %v142 = vpack.c.bf16 %v141, %v141
    %v143 = vunpack.c.l.bf16 %v60
    %v144 = vlaneseq
    %v145 = vshrl.u32 %v144, 7
    %v146 = vsub.s32 0, %v145
    %v147 = vrot.slane %v143, %v146
    %v164 = vunpack.c.l.b16 %v44
    %v165 = vunpack.c.l.b16 %v45
    %v166 = vunpack.c.l.b16 %v46
    %v167 = vunpack.c.l.b16 %v47
    %v168 = vunpack.c.l.b16 %v48
    %v169 = vunpack.c.l.b16 %v49
    %v170 = vunpack.c.l.b16 %v50
    %v171 = vunpack.c.l.b16 %v51
    %v172 = vunpack.c.l.b16 %v52
    %v173 = vunpack.c.l.b16 %v53
    %v174 = vunpack.c.l.b16 %v54
    %v175 = vunpack.c.l.b16 %v55
    %v176 = vunpack.c.l.b16 %v56
    %v177 = vunpack.c.l.b16 %v57
    %v178 = vunpack.c.l.b16 %v58
    %v179 = vunpack.c.l.b16 %v59
    %v180 = vpack.c.b16 %v165, %v164
    %v181 = vpack.c.b16 %v167, %v166
    %v182 = vpack.c.b16 %v169, %v168
    %v183 = vpack.c.b16 %v171, %v170
    %v184 = vpack.c.b16 %v173, %v172
    %v185 = vpack.c.b16 %v175, %v174
    %v186 = vpack.c.b16 %v177, %v176
    %v187 = vpack.c.b16 %v179, %v178
    %196 = vmatprep.subr.bf16.mxu0 0
    %197 = vmatpush1.bf16.msra.mxu0 %v180
    %198 = vmatprep.subr.bf16.mxu0 0
    %199 = vmatpush1.bf16.msra.mxu0 %v181
    %200 = vmatprep.subr.bf16.mxu0 0
    %201 = vmatpush1.bf16.msra.mxu0 %v182
    %202 = vmatprep.subr.bf16.mxu0 0
    %203 = vmatpush1.bf16.msra.mxu0 %v183
    %204 = vmatprep.subr.bf16.mxu0 0
    %205 = vmatpush1.bf16.msra.mxu0 %v184
    %206 = vmatprep.subr.bf16.mxu0 0
    %207 = vmatpush1.bf16.msra.mxu0 %v185
    %208 = vmatprep.subr.bf16.mxu0 0
    %209 = vmatpush1.bf16.msra.mxu0 %v186
    %210 = vmatprep.subr.bf16.mxu0 0
    %211 = vmatpush1.bf16.msra.mxu0 %v187
    %212 = vmatprep.subr.bf16.mxu0 0
    %213 = vmatpush1.bf16.msra.mxu0 0
    %214 = vmatprep.subr.bf16.mxu0 0
    %215 = vmatpush1.bf16.msra.mxu0 0
    %216 = vmatprep.subr.bf16.mxu0 0
    %217 = vmatpush1.bf16.msra.mxu0 0
    %218 = vmatprep.subr.bf16.mxu0 0
    %219 = vmatpush1.bf16.msra.mxu0 0
    %220 = vmatprep.subr.bf16.mxu0 0
    %221 = vmatpush1.bf16.msra.mxu0 0
    %222 = vmatprep.subr.bf16.mxu0 0
    %223 = vmatpush1.bf16.msra.mxu0 0
    %224 = vmatprep.subr.bf16.mxu0 0
    %225 = vmatpush1.bf16.msra.mxu0 0
    %226 = vmatprep.subr.bf16.mxu0 0
    %227 = vmatpush1.bf16.msra.mxu0 0
    %228 = vmatprep.mubr.bf16.mxu0 0
    %229 = vmatmul.mubr.bf16.gmra.mrb[0].mxu0 %v142
    %v230 = vpop.f32.mrb[0].mxu0
    %v231 = vadd.f32 %v147, %v230
    %v232 = vpop.f32.mrb[0].mxu0
    %v233 = vpop.f32.mrb[0].mxu0
    %v234 = vpop.f32.mrb[0].mxu0
    %235 = vdwg.mxu0
    %v236 = vmax.f32 %v231, 0.0
    %v237 = vpack.c.bf16 %v236, %v236
    %v238 = vunpack.c.l.bf16 %v77
    %v239 = vlaneseq
    %v240 = vshrl.u32 %v239, 7
    %v241 = vsub.s32 0, %v240
    %v242 = vrot.slane %v238, %v241
    %v259 = vunpack.c.l.b16 %v61
    %v260 = vunpack.c.l.b16 %v62
    %v261 = vunpack.c.l.b16 %v63
    %v262 = vunpack.c.l.b16 %v64
    %v263 = vunpack.c.l.b16 %v65
    %v264 = vunpack.c.l.b16 %v66
    %v265 = vunpack.c.l.b16 %v67
    %v266 = vunpack.c.l.b16 %v68
    %v267 = vunpack.c.l.b16 %v69
    %v268 = vunpack.c.l.b16 %v70
    %v269 = vunpack.c.l.b16 %v71
    %v270 = vunpack.c.l.b16 %v72
    %v271 = vunpack.c.l.b16 %v73
    %v272 = vunpack.c.l.b16 %v74
    %v273 = vunpack.c.l.b16 %v75
    %v274 = vunpack.c.l.b16 %v76
    %v275 = vpack.c.b16 %v260, %v259
    %v276 = vpack.c.b16 %v262, %v261
    %v277 = vpack.c.b16 %v264, %v263
    %v278 = vpack.c.b16 %v266, %v265
    %v279 = vpack.c.b16 %v268, %v267
    %v280 = vpack.c.b16 %v270, %v269
    %v281 = vpack.c.b16 %v272, %v271
    %v282 = vpack.c.b16 %v274, %v273
    %291 = vmatprep.subr.bf16.mxu0 0
    %292 = vmatpush1.bf16.msra.mxu0 %v275
    %293 = vmatprep.subr.bf16.mxu0 0
    %294 = vmatpush1.bf16.msra.mxu0 %v276
    %295 = vmatprep.subr.bf16.mxu0 0
    %296 = vmatpush1.bf16.msra.mxu0 %v277
    %297 = vmatprep.subr.bf16.mxu0 0
    %298 = vmatpush1.bf16.msra.mxu0 %v278
    %299 = vmatprep.subr.bf16.mxu0 0
    %300 = vmatpush1.bf16.msra.mxu0 %v279
    %301 = vmatprep.subr.bf16.mxu0 0
    %302 = vmatpush1.bf16.msra.mxu0 %v280
    %303 = vmatprep.subr.bf16.mxu0 0
    %304 = vmatpush1.bf16.msra.mxu0 %v281
    %305 = vmatprep.subr.bf16.mxu0 0
    %306 = vmatpush1.bf16.msra.mxu0 %v282
    %307 = vmatprep.subr.bf16.mxu0 0
    %308 = vmatpush1.bf16.msra.mxu0 0
    %309 = vmatprep.subr.bf16.mxu0 0
    %310 = vmatpush1.bf16.msra.mxu0 0
    %311 = vmatprep.subr.bf16.mxu0 0
    %312 = vmatpush1.bf16.msra.mxu0 0
    %313 = vmatprep.subr.bf16.mxu0 0
    %314 = vmatpush1.bf16.msra.mxu0 0
    %315 = vmatprep.subr.bf16.mxu0 0
    %316 = vmatpush1.bf16.msra.mxu0 0
    %317 = vmatprep.subr.bf16.mxu0 0
    %318 = vmatpush1.bf16.msra.mxu0 0
    %319 = vmatprep.subr.bf16.mxu0 0
    %320 = vmatpush1.bf16.msra.mxu0 0
    %321 = vmatprep.subr.bf16.mxu0 0
    %322 = vmatpush1.bf16.msra.mxu0 0
    %323 = vmatprep.mubr.bf16.mxu0 0
    %324 = vmatmul.mubr.bf16.gmra.mrb[0].mxu0 %v237
    %v325 = vpop.f32.mrb[0].mxu0
    %v326 = vadd.f32 %v242, %v325
    %v327 = vpop.f32.mrb[0].mxu0
    %v328 = vpop.f32.mrb[0].mxu0
    %v329 = vpop.f32.mrb[0].mxu0
    %330 = vdwg.mxu0
    %331 = vst [vmem:[#allocation7] sm:$0xff] %v326
    // Predicated region
    $region18: #{tpu_custom_call.1} parent=1 // pred_check
      _
    $region19: #{tpu_custom_call.1} parent=1 // pred_check_branch
      %333 = sbr.rel (0) target = $region21
    $region20: #{tpu_custom_call.1} parent=1 // pred_region
      %s335 = ssub.s32 128, 128
      %336 = vsyncadd [#allocation4], %s335
      %s338 = sshll.u32 [#allocation7], 4
      %s339 = int_to_ptr.vmem [resolvable:$true] %s338
      %341 = dma.vmem_to_hbm [thread:$0]  %s339, 128, %s2, [#allocation4]
    $region21: #{tpu_custom_call.1} parent=1 // pred_fallthru
      _
    // Predicated region
    $region22: #{tpu_custom_call.1} parent=1 // pred_check
      _
    $region23: #{tpu_custom_call.1} parent=1 // pred_check_branch
      %343 = sbr.rel (0) target = $region25
    $region24: #{tpu_custom_call.1} parent=1 // pred_region
      %344 = dma.done [#allocation4], 128
    $region25: #{tpu_custom_call.1} parent=1 // pred_fallthru
      _
    %345 = vsyncpa [#allocation3], 1
    %346 = vsyncpa [#allocation6], 1
    %347 = vsyncpa [#allocation4], 1

</llo_original>
